<compile_context>
chip_gen: v6e
topology: v6e:2x2x1
jax: 0.10.0
libtpu: 0.0.40
codegen_flags: <defaults>
</compile_context>

<pallas_src>
import functools

import jax
import jax.numpy as jnp
from jax.experimental import pallas as pl
from jax.experimental.pallas import tpu as pltpu

_LANE = 128
# Below this many elements a single fused XLA elementwise pass beats the
# standalone Pallas path (pad/depad + dispatch + per-step overhead dominate).
_XLA_FALLBACK_ELEMS = 256 * 1024  # 1 MiB of f32


def _pred_kernel_bias(x_ref, b_ref, o_ref, *, apply_sigmoid):
    # b_ref is a (1,) f32 scalar in SMEM.
    # NOTE: compute in f32 on all generations (v5e has no bf16 VPU/EUP path);
    # the op is memory-bound so the upcast costs nothing measurable.
    v = x_ref[...].astype(jnp.float32) + b_ref[0]
    if apply_sigmoid:
        v = jax.nn.sigmoid(v)
    o_ref[...] = v.astype(o_ref.dtype)


def _pred_kernel_nobias(x_ref, o_ref, *, apply_sigmoid):
    v = x_ref[...].astype(jnp.float32)
    if apply_sigmoid:
        v = jax.nn.sigmoid(v)
    o_ref[...] = v.astype(o_ref.dtype)


def _xla_prediction(x, bias, apply_sigmoid, use_bias):
    out = x
    if use_bias:
        out = out + jnp.asarray(bias, dtype=x.dtype).reshape(())
    if apply_sigmoid:
        out = jax.nn.sigmoid(out)
    return out


def prediction_layer(
    x,
    bias=None,
    task="binary",
    use_bias=True,
    *,
    tile_rows=4096,
    xla_fallback_elems=_XLA_FALLBACK_ELEMS,
):
    """Pallas implementation of deepctr_torch PredictionLayer.forward."""
    if task not in ("binary", "multiclass", "regression"):
        raise ValueError("task must be binary,multiclass or regression")
    if tile_rows < 8 or tile_rows % 8 != 0:
        raise ValueError("tile_rows must be a positive multiple of 8")

    apply_sigmoid = task == "binary"

    # Pure identity: no bias, no sigmoid -> skip everything (no HBM copy).
    if not apply_sigmoid and not use_bias:
        return x

    orig_shape = x.shape
    n = x.size

    # Small-input fast path: one fused XLA elementwise pass, no repack.
    if n <= xla_fallback_elems:
        return _xla_prediction(x, bias, apply_sigmoid, use_bias)

    # ---- Lane-dense repack: flatten, pad ONLY to the next multiple of 128. ----
    rows = pl.cdiv(n, _LANE)           # no rounding up to whole grid blocks
    n_pad = rows * _LANE               # residual pad <= 127 elements
    flat = jnp.ravel(x)
    if n_pad != n:
        flat = jnp.pad(flat, (0, n_pad - n))
    x2d = flat.reshape(rows, _LANE)

    if rows <= tile_rows:
        # Single full-extent block (block dims == array dims, so no (8,128)
        # divisibility requirement on the sublane axis).
        block_rows = rows
        grid_rows = 1
    else:
        # tile_rows is a multiple of 8; Pallas masks the partial trailing block.
        block_rows = tile_rows
        grid_rows = pl.cdiv(rows, tile_rows)

    x_spec = pl.BlockSpec((block_rows, _LANE), lambda i: (i, 0))
    o_spec = pl.BlockSpec((block_rows, _LANE), lambda i: (i, 0))
    out_shape = jax.ShapeDtypeStruct((rows, _LANE), x.dtype)

    if use_bias:
        assert bias is not None
        bias1d = jnp.asarray(bias, dtype=jnp.float32).reshape((1,))
        b_spec = pl.BlockSpec(memory_space=pltpu.MemorySpace.SMEM)
        kernel = functools.partial(_pred_kernel_bias, apply_sigmoid=apply_sigmoid)
        cparams = pltpu.CompilerParams(
            dimension_semantics=("parallel",),
            allow_input_fusion=[True, False],  # let the pad/reshape fuse into x2d
        )
        out2d = pl.pallas_call(
            kernel,
            out_shape=out_shape,
            grid=(grid_rows,),
            in_specs=[x_spec, b_spec],
            out_specs=o_spec,
            compiler_params=cparams,
        )(x2d, bias1d)
    else:
        kernel = functools.partial(_pred_kernel_nobias, apply_sigmoid=apply_sigmoid)
        cparams = pltpu.CompilerParams(
            dimension_semantics=("parallel",),
            allow_input_fusion=[True],
        )
        out2d = pl.pallas_call(
            kernel,
            out_shape=out_shape,
            grid=(grid_rows,),
            in_specs=[x_spec],
            out_specs=o_spec,
            compiler_params=cparams,
        )(x2d)

    # ---- Unpack back to the original logical shape. ----
    if n_pad == n:
        return out2d.reshape(orig_shape)          # pure bitcast reshape
    return out2d.reshape(-1)[:n].reshape(orig_shape)


def prediction_layer_ref(x, bias=None, task="binary", use_bias=True):
    out = x
    if use_bias:
        out = out + jnp.asarray(bias, dtype=x.dtype).reshape(())
    if task == "binary":
        out = jax.nn.sigmoid(out)
    return out


if __name__ == "__main__":
    key = jax.random.PRNGKey(0)
    k1, k2, k3, k4 = jax.random.split(key, 4)

    # Non-zero bias so the bias path is genuinely exercised; the module's
    # parameter init is torch.zeros((1,)).
    bias = jnp.array([0.37], dtype=jnp.float32)
    bias_init = jnp.zeros((1,), dtype=jnp.float32)

    # 1) Default config (binary + bias) on tiny (batch, 1) logits.
    #    xla_fallback_elems=0 forces the Pallas kernel even at this small size.
    x_small = jax.random.normal(k1, (2, 1), dtype=jnp.float32)
    out = jax.block_until_ready(
        prediction_layer(x_small, bias, "binary", True, xla_fallback_elems=0))
    ref = prediction_layer_ref(x_small, bias, "binary", True)
    assert out.shape == x_small.shape
    assert jnp.allclose(out, ref, atol=1e-6), "binary+bias mismatch"

    # Same config through the small-input XLA fast path (default threshold).
    out_fp = jax.block_until_ready(prediction_layer(x_small, bias, "binary", True))
    assert jnp.allclose(out_fp, ref, atol=1e-6), "fast-path mismatch"

    # Exact init state (bias == 0), Pallas path.
    out0 = jax.block_until_ready(
        prediction_layer(x_small, bias_init, "binary", True, xla_fallback_elems=0))
    ref0 = prediction_layer_ref(x_small, bias_init, "binary", True)
    assert jnp.allclose(out0, ref0, atol=1e-6), "binary+zero-bias mismatch"

    # 2) Regression (+bias, no sigmoid), batch not a multiple of 128
    #    -> exercises the minimal (<=127 elem) lane padding + depad slice.
    x_odd = jax.random.normal(k2, (1000, 1), dtype=jnp.float32)
    out_reg = jax.block_until_ready(
        prediction_layer(x_odd, bias, "regression", True, xla_fallback_elems=0))
    ref_reg = prediction_layer_ref(x_odd, bias, "regression", True)
    assert jnp.allclose(out_reg, ref_reg, atol=1e-6), "regression+bias mismatch"

    # 3) Identity fast path (no Pallas call, no copy).
    out_id = prediction_layer(x_odd, None, "regression", False)
    assert out_id is x_odd, "identity path should return the input unchanged"

    # 4) Binary, no bias: multi-block grid with a PARTIAL trailing block
    #    (4100 elems -> 33 rows, tile_rows=8 -> 5 blocks, last one 1 row).
    x_grid = jax.random.normal(k3, (4100, 1), dtype=jnp.float32)
    out_g = jax.block_until_ready(
        prediction_layer(x_grid, None, "binary", False,
                         tile_rows=8, xla_fallback_elems=0))
    ref_g = prediction_layer_ref(x_grid, None, "binary", False)
    assert jnp.allclose(out_g, ref_g, atol=1e-6), "tiled binary mismatch"

    # 5) bf16 input (binary + bias), Pallas path; kernel computes in f32 and
    #    casts back, so compare with bf16-level tolerance.
    x_bf16 = jax.random.normal(k4, (300, 1), dtype=jnp.bfloat16)
    out_bf = jax.block_until_ready(
        prediction_layer(x_bf16, bias, "binary", True, xla_fallback_elems=0))
    ref_bf = prediction_layer_ref(x_bf16.astype(jnp.float32), bias, "binary", True)
    assert jnp.allclose(out_bf.astype(jnp.float32), ref_bf, atol=2e-2), "bf16 mismatch"

    # 6) Bad tile_rows must fail loudly.
    try:
        prediction_layer(x_grid, None, "binary", False, tile_rows=100,
                         xla_fallback_elems=0)
        raise AssertionError("tile_rows=100 should have been rejected")
    except ValueError:
        pass

    print("KERNEL_OK")
</pallas_src>

<mosaic_0001>
module attributes {stable_mosaic.version = 11 : i64} {
  func.func @_pred_kernel_bias(%arg0: i32, %arg1: memref<1x128xf32, #tpu.memory_space<vmem>>, %arg2: memref<1xf32, #tpu.memory_space<smem>>, %arg3: memref<1x128xf32, #tpu.memory_space<vmem>>) attributes {dimension_semantics = [#tpu.dimension_semantics<parallel>], iteration_bounds = array<i64: 1>, scalar_prefetch = 0 : i64, scratch_operands = 0 : i64, tpu.core_type = #tpu.core_type<tc>, window_params = [{transform_indices = @transform_0, window_bounds = array<i64: 1, 128>}, {transform_indices = @transform_1, window_bounds = array<i64: 1>}, {transform_indices = @transform_2, window_bounds = array<i64: 1, 128>}]} {
    %c0 = arith.constant 0 : index
    %c0_0 = arith.constant 0 : index
    %0 = vector.load %arg1[%c0, %c0_0] : memref<1x128xf32, #tpu.memory_space<vmem>>, vector<1x128xf32>
    %c0_1 = arith.constant 0 : index
    %1 = memref.load %arg2[%c0_1] : memref<1xf32, #tpu.memory_space<smem>>
    %2 = vector.broadcast %1 : f32 to vector<1x128xf32>
    %3 = arith.addf %0, %2 : vector<1x128xf32>
    %4 = arith.negf %3 : vector<1x128xf32>
    %5 = math.exp %4 : vector<1x128xf32>
    %cst = arith.constant 1.000000e+00 : f32
    %6 = vector.broadcast %cst : f32 to vector<1x128xf32>
    %7 = arith.addf %6, %5 : vector<1x128xf32>
    %8 = arith.divf %6, %7 : vector<1x128xf32>
    %c0_2 = arith.constant 0 : index
    %c0_3 = arith.constant 0 : index
    %9 = vector.load %arg3[%c0_2, %c0_3] : memref<1x128xf32, #tpu.memory_space<vmem>>, vector<1x128xf32>
    tpu.vector_store %arg3[%c0_2, %c0_3], %8 {strides = array<i32>} : memref<1x128xf32, #tpu.memory_space<vmem>>, vector<1x128xf32>,
    return
  }
  func.func @transform_0(%arg0: i32) -> (i32, i32) {
    %c0_i32 = arith.constant 0 : i32
    %c0_i32_0 = arith.constant 0 : i32
    return %arg0, %c0_i32 : i32, i32
  }
  func.func @transform_1(%arg0: i32) -> i32 {
    %c0_i32 = arith.constant 0 : i32
    %c0_i32_0 = arith.constant 0 : i32
    return %c0_i32 : i32
  }
  func.func @transform_2(%arg0: i32) -> (i32, i32) {
    %c0_i32 = arith.constant 0 : i32
    %c0_i32_0 = arith.constant 0 : i32
    return %arg0, %c0_i32 : i32, i32
  }
}

</mosaic_0001>

<llo_original>
// kernel: tpu_custom_call.1
$region0: #{tpu_custom_call.1}
  #allocation0 [shape = 'u32[]', space=smem, size = 0x4, offset = 0x4, fixed_abs, tag = 'smem constant byte address 0x4 - core index']
  #allocation1 [shape = 'u32[144,128]{1,0:T(1,128)}', space=vmem, size = 0x12000, scoped, tag = 'internal scratch']
  #allocation2 [shape = 'f32[1]{0:T(128)S(6)}', space=smem, size = 0x200, scoped, tag = 'scoped memory for tpu_custom_call.1']
  %s0 = inlined_call_operand.vmem [shape: f32[1,128], index: 0, kind: input, shape index: {}]
  %s1 = inlined_call_operand.<no memory space> [shape: f32[1], index: 1, kind: input, shape index: {}]
  %s2 = inlined_call_operand.hbm [shape: f32[1,128], index: 2, kind: output, shape index: {}]
  %s3 = sld [smem:[#allocation0]]
  $region18: #{tpu_custom_call.1} parent=0
    _
  %s5 = ssub.s32 1, %s3
  %s6 = scalar_select 0, %s5, %s3
  %7 = sst [smem:[#allocation2]] %s1
  $region1: #{tpu_custom_call.1} parent=0
    #allocation3 [shape = 'u8[512]{0}', space=vmem, size = 0x400, scoped, tag = 'output window, operand 0, single buffered']
    #allocation4 [shape = 's32[1]{0}', space=sflag, size = 0x4, scoped, tag = 'scoped memory for tpu_custom_call.1']
    %8 = vsyncpa [#allocation4], 0
    // Predicated region
    $region2: #{tpu_custom_call.1} parent=1 // pred_check
      _
    $region3: #{tpu_custom_call.1} parent=1 // pred_check_branch
      %10 = sbr.rel (0) target = $region5
    $region4: #{tpu_custom_call.1} parent=1 // pred_region
      _
    $region5: #{tpu_custom_call.1} parent=1 // pred_fallthru
      _
    // Predicated region
    $region6: #{tpu_custom_call.1} parent=1 // pred_check
      _
    $region7: #{tpu_custom_call.1} parent=1 // pred_check_branch
      %12 = sbr.rel (0) target = $region9
    $region8: #{tpu_custom_call.1} parent=1 // pred_region
      _
    $region9: #{tpu_custom_call.1} parent=1 // pred_fallthru
      _
    %v13 = vld [vmem:[%s0] sm:$0x1]
    %s14 = sld [smem:[#allocation2]]
    %v15 = vstv %s14
    %v16 = vadd.f32 %v13, %v15
    %v17 = vxor.u32 %v16, 2147483648
    %v18 = vmul.f32 %v17, 1.442695
    %v19 = vpow.pop %v18
    %v20 = vadd.f32 %v19, 1.0
    %v21 = vrcp.pop %v20
    %v22 = vmul.f32 1.0, %v21
    %23 = vst [vmem:[#allocation3] sm:$0x1] %v22
    // Predicated region
    $region10: #{tpu_custom_call.1} parent=1 // pred_check
      _
    $region11: #{tpu_custom_call.1} parent=1 // pred_check_branch
      %25 = sbr.rel (0) target = $region13
    $region12: #{tpu_custom_call.1} parent=1 // pred_region
      %s27 = ssub.s32 16, 16
      %28 = vsyncadd [#allocation4], %s27
      %s30 = sshll.u32 [#allocation3], 4
      %s31 = int_to_ptr.vmem [resolvable:$true] %s30
      %33 = dma.vmem_to_hbm [thread:$0]  %s31, 16, %s2, [#allocation4]
    $region13: #{tpu_custom_call.1} parent=1 // pred_fallthru
      _
    // Predicated region
    $region14: #{tpu_custom_call.1} parent=1 // pred_check
      _
    $region15: #{tpu_custom_call.1} parent=1 // pred_check_branch
      %35 = sbr.rel (0) target = $region17
    $region16: #{tpu_custom_call.1} parent=1 // pred_region
      %36 = dma.done [#allocation4], 16
    $region17: #{tpu_custom_call.1} parent=1 // pred_fallthru
      _
    %37 = vsyncpa [#allocation4], 1

</llo_original>
